<compile_context>
chip_gen: v6e
topology: v6e:2x2x1
jax: 0.10.0
libtpu: 0.0.40
codegen_flags: <defaults>
</compile_context>

<pallas_src>
import functools

import jax
import jax.numpy as jnp
from jax.experimental import pallas as pl
from jax.experimental.pallas import tpu as pltpu


# ---------------------------------------------------------------------------
# Pallas kernel: the whole Discriminator forward for the whole batch.
# refs = (x, M1, b1, ..., Mr, br, M_heads, out).  Everything lives in VMEM.
# ---------------------------------------------------------------------------
def _fused_forward_kernel(*refs, slopes):
    x_ref, o_ref = refs[0], refs[-1]
    layer_refs = refs[1:-2]          # (M_i, b_i) pairs for the strided convs
    mh_ref = refs[-2]                # concatenated (and lane-padded) head matrix

    h = x_ref[...]                   # (N, Cin*H*W) flat-NCHW activations, f32
    for li, slope in enumerate(slopes):
        m_ref = layer_refs[2 * li]
        b_ref = layer_refs[2 * li + 1]
        # bf16 x bf16 -> f32 accumulate: native MXU path.
        a = jnp.dot(h.astype(jnp.bfloat16), m_ref[...],
                    preferred_element_type=jnp.float32)
        a = a + b_ref[...]
        h = jnp.where(a >= 0.0, a, slope * a)      # LeakyReLU on the VPU (f32)
    # Both heads in one MXU push (out_src || out_cls || zero padding to 128).
    o_ref[...] = jnp.dot(h.astype(jnp.bfloat16), mh_ref[...],
                         preferred_element_type=jnp.float32).astype(o_ref.dtype)


# ---------------------------------------------------------------------------
# Weight-side folding: Conv2d -> dense matrix acting on flat-NCHW activations.
# Exact in f32 (every (input,output) position pair hits at most one kernel
# tap, so the fold is a pure tap selection).
# ---------------------------------------------------------------------------
def _conv_as_matrix(w, h_in, w_in, stride, pad):
    cout, cin, kh, kw = w.shape
    ho = (h_in + 2 * pad - kh) // stride + 1
    wo = (w_in + 2 * pad - kw) // stride + 1

    def taps(in_size, out_size, k):
        idx_in = jnp.arange(in_size)[:, None]
        idx_out = jnp.arange(out_size)[None, :]
        tap = idx_in - (stride * idx_out - pad)            # kernel offset
        valid = (tap >= 0) & (tap < k)
        sel = (tap[None] == jnp.arange(k)[:, None, None]) & valid[None]
        return sel.astype(w.dtype)                          # (k, in, out)

    sy = taps(h_in, ho, kh)                                 # (kh, H,  Ho)
    sx = taps(w_in, wo, kw)                                 # (kw, W,  Wo)
    # M[(c,y,x),(co,hout,wout)] = W[co,c, y-(s*hout-p), x-(s*wout-p)] if valid
    m = jnp.einsum("ocij,iyh,jxw->cyxohw", w, sy, sx)
    return m.reshape(cin * h_in * w_in, cout * ho * wo), ho, wo


# ---------------------------------------------------------------------------
# One-time folding of the parameters.  Call this once at parameter-load time
# and reuse the result; re-folding on every forward would cost about as much
# HBM traffic as the fused kernel itself.
# ---------------------------------------------------------------------------
def fold_discriminator_params(params, image_size, repeat_num=3):
    H = W = image_size
    cin0 = params["main"][0][0].shape[1]

    mats = []
    h_sp, w_sp = H, W
    for (w, b) in params["main"]:
        m, ho, wo = _conv_as_matrix(w.astype(jnp.float32), h_sp, w_sp,
                                    stride=2, pad=1)
        cout = w.shape[0]
        b_e = jnp.repeat(b.astype(jnp.float32), ho * wo).reshape(1, cout * ho * wo)
        mats.append((m.astype(jnp.bfloat16), b_e))          # weights bf16, bias f32
        h_sp, w_sp = ho, wo

    m_src, ho_s, wo_s = _conv_as_matrix(
        params["conv1_w"].astype(jnp.float32), h_sp, w_sp, 1, 1)
    m_cls, ho_c, wo_c = _conv_as_matrix(
        params["conv2_w"].astype(jnp.float32), h_sp, w_sp, 1, 0)
    # out_cls.view(N, c_dim) in the reference module requires 1x1 spatial output.
    assert (ho_c, wo_c) == (1, 1), "conv2 must reduce to a 1x1 spatial output"
    c_dim = params["conv2_w"].shape[0]
    n_src = ho_s * wo_s
    n_heads = n_src + c_dim

    # Lane-dense output: pad the fused head matrix to a multiple of 128 cols.
    n_out_pad = max(128, ((n_heads + 127) // 128) * 128)
    m_heads = jnp.concatenate([m_src, m_cls], axis=1)
    m_heads = jnp.pad(m_heads, ((0, 0), (0, n_out_pad - n_heads)))
    m_heads = m_heads.astype(jnp.bfloat16)

    folded = {"mats": mats, "m_heads": m_heads}
    meta = {
        "k0": cin0 * H * W,
        "n_src": n_src,
        "c_dim": c_dim,
        "ho_s": ho_s,
        "wo_s": wo_s,
        "n_out_pad": n_out_pad,
        "slopes": tuple([0.001] + [0.01] * (repeat_num - 1)),  # matches module
    }
    return folded, meta


# ---------------------------------------------------------------------------
# Forward: one fused pallas_call over the pre-folded matrices.
# ---------------------------------------------------------------------------
def discriminator_forward(x, folded, *, meta):
    N = x.shape[0]
    k0 = meta["k0"]
    n_out = meta["n_out_pad"]
    x_flat = x.reshape(N, k0).astype(jnp.float32)            # flat NCHW rows

    const2d = lambda n: (0, 0)
    in_specs = [pl.BlockSpec((N, k0), const2d)]
    operands = [x_flat]
    for m, b_e in folded["mats"]:
        in_specs += [pl.BlockSpec(m.shape, const2d),
                     pl.BlockSpec(b_e.shape, const2d)]
        operands += [m, b_e]
    mh = folded["m_heads"]
    in_specs.append(pl.BlockSpec(mh.shape, const2d))
    operands.append(mh)

    flops = 2 * N * (sum(m.shape[0] * m.shape[1] for m, _ in folded["mats"])
                     + mh.shape[0] * mh.shape[1])
    bytes_accessed = (2 * (sum(m.size for m, _ in folded["mats"]) + mh.size)
                      + 4 * (x_flat.size + N * n_out
                             + sum(b.size for _, b in folded["mats"])))

    # TODO(synk): for realistic image sizes, switch to activation-side im2col
    # with (8,128)-tiled M/K grid axes + f32 VMEM accumulator; the folded
    # matrices here grow quadratically with spatial size and would overflow
    # v7x's 64 MiB VMEM long before v5e/v6e's 128 MiB.
    out = pl.pallas_call(
        functools.partial(_fused_forward_kernel, slopes=meta["slopes"]),
        grid=(1,),                       # single step: whole batch, one M=N chain
        in_specs=in_specs,
        out_specs=pl.BlockSpec((N, n_out), const2d),
        out_shape=jax.ShapeDtypeStruct((N, n_out), jnp.float32),
        compiler_params=pltpu.CompilerParams(
            dimension_semantics=("arbitrary",)),
        cost_estimate=pl.CostEstimate(flops=flops, transcendentals=0,
                                      bytes_accessed=bytes_accessed),
    )(*operands)

    n_src = meta["n_src"]
    out_src = out[:, :n_src].reshape(N, 1, meta["ho_s"], meta["wo_s"])  # NCHW
    out_cls = out[:, n_src:n_src + meta["c_dim"]]                       # (N, c_dim)
    return out_src, out_cls


# ---------------------------------------------------------------------------
# Parameter init (matches PyTorch Conv2d default init bounds).
# ---------------------------------------------------------------------------
def init_discriminator_params(key, image_size=16, conv_dim=8, c_dim=4,
                              repeat_num=3, input_dim=1):
    def conv_w(key, cout, cin, k):
        fan_in = cin * k * k
        bound = 1.0 / jnp.sqrt(fan_in)
        return jax.random.uniform(key, (cout, cin, k, k), jnp.float32,
                                  -bound, bound)

    def conv_b(key, cout, fan_in):
        bound = 1.0 / jnp.sqrt(fan_in)
        return jax.random.uniform(key, (cout,), jnp.float32, -bound, bound)

    keys = jax.random.split(key, 2 * repeat_num + 2)
    params = {"main": []}
    cin, cout = input_dim, conv_dim
    for i in range(repeat_num):
        w = conv_w(keys[2 * i], cout, cin, 4)
        b = conv_b(keys[2 * i + 1], cout, cin * 4 * 4)
        params["main"].append((w, b))
        cin, cout = cout, cout * 2
    curr_dim = cin
    k_last = image_size // (2 ** repeat_num)
    params["conv1_w"] = conv_w(keys[-2], 1, curr_dim, 3)
    params["conv2_w"] = conv_w(keys[-1], c_dim, curr_dim, k_last)
    return params


# ---------------------------------------------------------------------------
# Pure-JAX f32 reference (correctness check only).
# ---------------------------------------------------------------------------
def _conv_ref(x, w, b, stride, pad):
    out = jax.lax.conv_general_dilated(
        x, w, (stride, stride), [(pad, pad), (pad, pad)],
        dimension_numbers=("NCHW", "OIHW", "NCHW"))
    if b is not None:
        out = out + b.reshape(1, -1, 1, 1)
    return out


def _forward_ref(x, params, repeat_num=3):
    h = x
    slopes = [0.001] + [0.01] * (repeat_num - 1)
    for (w, b), s in zip(params["main"], slopes):
        h = _conv_ref(h, w, b, 2, 1)
        h = jnp.where(h >= 0.0, h, s * h)
    out_src = _conv_ref(h, params["conv1_w"], None, 1, 1)
    out_cls = _conv_ref(h, params["conv2_w"], None, 1, 0)
    return out_src, out_cls.reshape(out_cls.shape[0], out_cls.shape[1])


if __name__ == "__main__":
    IMAGE_SIZE, CONV_DIM, C_DIM, REPEAT_NUM, INPUT_DIM, BATCH = 16, 8, 4, 3, 1, 2

    key = jax.random.PRNGKey(0)
    k_params, k_x = jax.random.split(key)
    params = init_discriminator_params(k_params, IMAGE_SIZE, CONV_DIM, C_DIM,
                                       REPEAT_NUM, INPUT_DIM)
    x = jax.random.normal(k_x, (BATCH, INPUT_DIM, IMAGE_SIZE, IMAGE_SIZE),
                          jnp.float32)

    # One-time weight folding (amortized over all subsequent forwards).
    folded, meta = fold_discriminator_params(params, IMAGE_SIZE, REPEAT_NUM)
    folded = jax.block_until_ready(folded)

    fwd = jax.jit(functools.partial(discriminator_forward, meta=meta))
    out_src, out_cls = fwd(x, folded)
    jax.block_until_ready((out_src, out_cls))

    # shapes match PyTorch semantics
    assert out_src.shape == (BATCH, 1, IMAGE_SIZE // 2 ** REPEAT_NUM,
                             IMAGE_SIZE // 2 ** REPEAT_NUM)
    assert out_cls.shape == (BATCH, C_DIM)

    # numerical check against pure-JAX f32 reference (bf16 folded weights)
    ref_src, ref_cls = _forward_ref(x, params, REPEAT_NUM)
    assert jnp.allclose(out_src, ref_src, atol=2e-2, rtol=2e-2)
    assert jnp.allclose(out_cls, ref_cls, atol=2e-2, rtol=2e-2)

    print("KERNEL_OK")
</pallas_src>

<mosaic_0001>
module attributes {stable_mosaic.version = 11 : i64} {
  func.func @_fused_forward_kernel(%arg0: i32, %arg1: memref<2x256xf32, #tpu.memory_space<vmem>>, %arg2: memref<256x512xbf16, #tpu.memory_space<vmem>>, %arg3: memref<1x512xf32, #tpu.memory_space<vmem>>, %arg4: memref<512x256xbf16, #tpu.memory_space<vmem>>, %arg5: memref<1x256xf32, #tpu.memory_space<vmem>>, %arg6: memref<256x128xbf16, #tpu.memory_space<vmem>>, %arg7: memref<1x128xf32, #tpu.memory_space<vmem>>, %arg8: memref<128x128xbf16, #tpu.memory_space<vmem>>, %arg9: memref<2x128xf32, #tpu.memory_space<vmem>>) attributes {dimension_semantics = [#tpu.dimension_semantics<arbitrary>], iteration_bounds = array<i64: 1>, scalar_prefetch = 0 : i64, scratch_operands = 0 : i64, tpu.core_type = #tpu.core_type<tc>, window_params = [{pipeline_mode = #tpu.pipeline_mode<synchronous>, transform_indices = @transform_0, window_bounds = array<i64: 2, 256>}, {pipeline_mode = #tpu.pipeline_mode<synchronous>, transform_indices = @transform_1, window_bounds = array<i64: 256, 512>}, {pipeline_mode = #tpu.pipeline_mode<synchronous>, transform_indices = @transform_2, window_bounds = array<i64: 1, 512>}, {pipeline_mode = #tpu.pipeline_mode<synchronous>, transform_indices = @transform_3, window_bounds = array<i64: 512, 256>}, {pipeline_mode = #tpu.pipeline_mode<synchronous>, transform_indices = @transform_4, window_bounds = array<i64: 1, 256>}, {pipeline_mode = #tpu.pipeline_mode<synchronous>, transform_indices = @transform_5, window_bounds = array<i64: 256, 128>}, {pipeline_mode = #tpu.pipeline_mode<synchronous>, transform_indices = @transform_6, window_bounds = array<i64: 1, 128>}, {pipeline_mode = #tpu.pipeline_mode<synchronous>, transform_indices = @transform_7, window_bounds = array<i64: 128, 128>}, {pipeline_mode = #tpu.pipeline_mode<synchronous>, transform_indices = @transform_8, window_bounds = array<i64: 2, 128>}]} {
    %c0 = arith.constant 0 : index
    %c0_0 = arith.constant 0 : index
    %0 = vector.load %arg1[%c0, %c0_0] : memref<2x256xf32, #tpu.memory_space<vmem>>, vector<2x256xf32>
    %1 = arith.truncf %0 : vector<2x256xf32> to vector<2x256xbf16>
    %c0_1 = arith.constant 0 : index
    %c0_2 = arith.constant 0 : index
    %2 = vector.load %arg2[%c0_1, %c0_2] : memref<256x512xbf16, #tpu.memory_space<vmem>>, vector<256x512xbf16>
    %cst = arith.constant dense<0.000000e+00> : vector<2x512xf32>
    %3 = tpu.matmul %1, %2, %cst {dimension_numbers = #tpu.dot_dimension_numbers<[1], [0], [0], [1], [0, 0, 1, 1], [], []>} : vector<2x256xbf16>, vector<256x512xbf16>, vector<2x512xf32> -> vector<2x512xf32>
    %c0_3 = arith.constant 0 : index
    %c0_4 = arith.constant 0 : index
    %4 = vector.load %arg3[%c0_3, %c0_4] : memref<1x512xf32, #tpu.memory_space<vmem>>, vector<1x512xf32>
    %5 = vector.broadcast %4 : vector<1x512xf32> to vector<2x512xf32>
    %6 = arith.addf %3, %5 : vector<2x512xf32>
    %cst_5 = arith.constant 0.000000e+00 : f32
    %7 = vector.broadcast %cst_5 : f32 to vector<2x512xf32>
    %8 = arith.cmpf oge, %6, %7 : vector<2x512xf32>
    %cst_6 = arith.constant 1.000000e-03 : f32
    %9 = vector.broadcast %cst_6 : f32 to vector<2x512xf32>
    %10 = arith.mulf %9, %6 : vector<2x512xf32>
    %11 = arith.select %8, %6, %10 : vector<2x512xi1>, vector<2x512xf32>
    %12 = arith.truncf %11 : vector<2x512xf32> to vector<2x512xbf16>
    %c0_7 = arith.constant 0 : index
    %c0_8 = arith.constant 0 : index
    %13 = vector.load %arg4[%c0_7, %c0_8] : memref<512x256xbf16, #tpu.memory_space<vmem>>, vector<512x256xbf16>
    %cst_9 = arith.constant dense<0.000000e+00> : vector<2x256xf32>
    %14 = tpu.matmul %12, %13, %cst_9 {dimension_numbers = #tpu.dot_dimension_numbers<[1], [0], [0], [1], [0, 0, 1, 1], [], []>} : vector<2x512xbf16>, vector<512x256xbf16>, vector<2x256xf32> -> vector<2x256xf32>
    %c0_10 = arith.constant 0 : index
    %c0_11 = arith.constant 0 : index
    %15 = vector.load %arg5[%c0_10, %c0_11] : memref<1x256xf32, #tpu.memory_space<vmem>>, vector<1x256xf32>
    %16 = vector.broadcast %15 : vector<1x256xf32> to vector<2x256xf32>
    %17 = arith.addf %14, %16 : vector<2x256xf32>
    %cst_12 = arith.constant 0.000000e+00 : f32
    %18 = vector.broadcast %cst_12 : f32 to vector<2x256xf32>
    %19 = arith.cmpf oge, %17, %18 : vector<2x256xf32>
    %cst_13 = arith.constant 0.00999999977 : f32
    %20 = vector.broadcast %cst_13 : f32 to vector<2x256xf32>
    %21 = arith.mulf %20, %17 : vector<2x256xf32>
    %22 = arith.select %19, %17, %21 : vector<2x256xi1>, vector<2x256xf32>
    %23 = arith.truncf %22 : vector<2x256xf32> to vector<2x256xbf16>
    %c0_14 = arith.constant 0 : index
    %c0_15 = arith.constant 0 : index
    %24 = vector.load %arg6[%c0_14, %c0_15] : memref<256x128xbf16, #tpu.memory_space<vmem>>, vector<256x128xbf16>
    %cst_16 = arith.constant dense<0.000000e+00> : vector<2x128xf32>
    %25 = tpu.matmul %23, %24, %cst_16 {dimension_numbers = #tpu.dot_dimension_numbers<[1], [0], [0], [1], [0, 0, 1, 1], [], []>} : vector<2x256xbf16>, vector<256x128xbf16>, vector<2x128xf32> -> vector<2x128xf32>
    %c0_17 = arith.constant 0 : index
    %c0_18 = arith.constant 0 : index
    %26 = vector.load %arg7[%c0_17, %c0_18] : memref<1x128xf32, #tpu.memory_space<vmem>>, vector<1x128xf32>
    %27 = vector.broadcast %26 : vector<1x128xf32> to vector<2x128xf32>
    %28 = arith.addf %25, %27 : vector<2x128xf32>
    %cst_19 = arith.constant 0.000000e+00 : f32
    %29 = vector.broadcast %cst_19 : f32 to vector<2x128xf32>
    %30 = arith.cmpf oge, %28, %29 : vector<2x128xf32>
    %cst_20 = arith.constant 0.00999999977 : f32
    %31 = vector.broadcast %cst_20 : f32 to vector<2x128xf32>
    %32 = arith.mulf %31, %28 : vector<2x128xf32>
    %33 = arith.select %30, %28, %32 : vector<2x128xi1>, vector<2x128xf32>
    %34 = arith.truncf %33 : vector<2x128xf32> to vector<2x128xbf16>
    %c0_21 = arith.constant 0 : index
    %c0_22 = arith.constant 0 : index
    %35 = vector.load %arg8[%c0_21, %c0_22] : memref<128x128xbf16, #tpu.memory_space<vmem>>, vector<128x128xbf16>
    %cst_23 = arith.constant dense<0.000000e+00> : vector<2x128xf32>
    %36 = tpu.matmul %34, %35, %cst_23 {dimension_numbers = #tpu.dot_dimension_numbers<[1], [0], [0], [1], [0, 0, 1, 1], [], []>} : vector<2x128xbf16>, vector<128x128xbf16>, vector<2x128xf32> -> vector<2x128xf32>
    %c0_24 = arith.constant 0 : index
    %c0_25 = arith.constant 0 : index
    %37 = vector.load %arg9[%c0_24, %c0_25] : memref<2x128xf32, #tpu.memory_space<vmem>>, vector<2x128xf32>
    tpu.vector_store %arg9[%c0_24, %c0_25], %36 {strides = array<i32>} : memref<2x128xf32, #tpu.memory_space<vmem>>, vector<2x128xf32>,
    return
  }
  func.func @transform_0(%arg0: i32) -> (i32, i32) {
    %c0_i32 = arith.constant 0 : i32
    %c0_i32_0 = arith.constant 0 : i32
    %c0_i32_1 = arith.constant 0 : i32
    return %c0_i32, %c0_i32_0 : i32, i32
  }
  func.func @transform_1(%arg0: i32) -> (i32, i32) {
    %c0_i32 = arith.constant 0 : i32
    %c0_i32_0 = arith.constant 0 : i32
    %c0_i32_1 = arith.constant 0 : i32
    return %c0_i32, %c0_i32_0 : i32, i32
  }
  func.func @transform_2(%arg0: i32) -> (i32, i32) {
    %c0_i32 = arith.constant 0 : i32
    %c0_i32_0 = arith.constant 0 : i32
    %c0_i32_1 = arith.constant 0 : i32
    return %c0_i32, %c0_i32_0 : i32, i32
  }
  func.func @transform_3(%arg0: i32) -> (i32, i32) {
    %c0_i32 = arith.constant 0 : i32
    %c0_i32_0 = arith.constant 0 : i32
    %c0_i32_1 = arith.constant 0 : i32
    return %c0_i32, %c0_i32_0 : i32, i32
  }
  func.func @transform_4(%arg0: i32) -> (i32, i32) {
    %c0_i32 = arith.constant 0 : i32
    %c0_i32_0 = arith.constant 0 : i32
    %c0_i32_1 = arith.constant 0 : i32
    return %c0_i32, %c0_i32_0 : i32, i32
  }
  func.func @transform_5(%arg0: i32) -> (i32, i32) {
    %c0_i32 = arith.constant 0 : i32
    %c0_i32_0 = arith.constant 0 : i32
    %c0_i32_1 = arith.constant 0 : i32
    return %c0_i32, %c0_i32_0 : i32, i32
  }
  func.func @transform_6(%arg0: i32) -> (i32, i32) {
    %c0_i32 = arith.constant 0 : i32
    %c0_i32_0 = arith.constant 0 : i32
    %c0_i32_1 = arith.constant 0 : i32
    return %c0_i32, %c0_i32_0 : i32, i32
  }
  func.func @transform_7(%arg0: i32) -> (i32, i32) {
    %c0_i32 = arith.constant 0 : i32
    %c0_i32_0 = arith.constant 0 : i32
    %c0_i32_1 = arith.constant 0 : i32
    return %c0_i32, %c0_i32_0 : i32, i32
  }
  func.func @transform_8(%arg0: i32) -> (i32, i32) {
    %c0_i32 = arith.constant 0 : i32
    %c0_i32_0 = arith.constant 0 : i32
    %c0_i32_1 = arith.constant 0 : i32
    return %c0_i32, %c0_i32_0 : i32, i32
  }
}

</mosaic_0001>

<llo_original>
// kernel: discriminator_forward.1
$region0: #{discriminator_forward.1}
  #allocation0 [shape = 'u32[]', space=smem, size = 0x4, offset = 0x4, fixed_abs, tag = 'smem constant byte address 0x4 - core index']
  #allocation1 [shape = 'u32[144,128]{1,0:T(1,128)}', space=vmem, size = 0x12000, scoped, tag = 'internal scratch']
  %s0 = inlined_call_operand.vmem [shape: f32[2,256], index: 0, kind: input, shape index: {}]
  %s1 = inlined_call_operand.hbm [shape: bf16[256,512], index: 1, kind: input, shape index: {}]
  %s2 = inlined_call_operand.vmem [shape: f32[1,512], index: 2, kind: input, shape index: {}]
  %s3 = inlined_call_operand.hbm [shape: bf16[512,256], index: 3, kind: input, shape index: {}]
  %s4 = inlined_call_operand.vmem [shape: f32[1,256], index: 4, kind: input, shape index: {}]
  %s5 = inlined_call_operand.hbm [shape: bf16[256,128], index: 5, kind: input, shape index: {}]
  %s6 = inlined_call_operand.vmem [shape: f32[1,128], index: 6, kind: input, shape index: {}]
  %s7 = inlined_call_operand.hbm [shape: bf16[128,128], index: 7, kind: input, shape index: {}]
  %s8 = inlined_call_operand.vmem [shape: f32[2,128], index: 8, kind: output, shape index: {}]
  %s9 = sld [smem:[#allocation0]]
  $region58: #{discriminator_forward.1} parent=0
    _
  %s11 = ssub.s32 1, %s9
  %s12 = scalar_select 0, %s11, %s9
  $region1: #{discriminator_forward.1} parent=0
    #allocation2 [shape = 'u8[262144]{0}', space=vmem, size = 0x40000, scoped, tag = 'input window, operand 1, single buffered']
    #allocation3 [shape = 's32[1]{0}', space=sflag, size = 0x4, scoped, tag = 'scoped memory for discriminator_forward.1']
    #allocation4 [shape = 'u8[262144]{0}', space=vmem, size = 0x40000, scoped, tag = 'input window, operand 3, single buffered']
    #allocation5 [shape = 's32[1]{0}', space=sflag, size = 0x4, scoped, tag = 'scoped memory for discriminator_forward.1']
    #allocation6 [shape = 'u8[65536]{0}', space=vmem, size = 0x10000, scoped, tag = 'input window, operand 5, single buffered']
    #allocation7 [shape = 'u8[32768]{0}', space=vmem, size = 0x8000, scoped, tag = 'input window, operand 7, single buffered']
    #allocation8 [shape = 's32[1]{0}', space=sflag, size = 0x4, scoped, tag = 'scoped memory for discriminator_forward.1']
    %13 = vsyncpa [#allocation3], 0
    %14 = vsyncpa [#allocation5], 0
    %15 = vsyncpa [#allocation8], 0
    // Predicated region
    $region2: #{discriminator_forward.1} parent=1 // pred_check
      _
    $region3: #{discriminator_forward.1} parent=1 // pred_check_branch
      %17 = sbr.rel (0) target = $region5
    $region4: #{discriminator_forward.1} parent=1 // pred_region
      _
    $region5: #{discriminator_forward.1} parent=1 // pred_fallthru
      _
    // Predicated region
    $region6: #{discriminator_forward.1} parent=1 // pred_check
      _
    $region7: #{discriminator_forward.1} parent=1 // pred_check_branch
      %19 = sbr.rel (0) target = $region9
    $region8: #{discriminator_forward.1} parent=1 // pred_region
      %s21 = ssub.s32 8192, 8192
      %22 = vsyncadd [#allocation3], %s21
      %s23 = sshll.u32 [#allocation2], 4
      %s24 = int_to_ptr.vmem [resolvable:$true] %s23
      %29 = dma.hbm_to_vmem [thread:$0]  %s1, 8192, %s24, [#allocation3], 256, 256, 16
    $region9: #{discriminator_forward.1} parent=1 // pred_fallthru
      _
    // Predicated region
    $region10: #{discriminator_forward.1} parent=1 // pred_check
      _
    $region11: #{discriminator_forward.1} parent=1 // pred_check_branch
      %31 = sbr.rel (0) target = $region13
    $region12: #{discriminator_forward.1} parent=1 // pred_region
      _
    $region13: #{discriminator_forward.1} parent=1 // pred_fallthru
      _
    // Predicated region
    $region14: #{discriminator_forward.1} parent=1 // pred_check
      _
    $region15: #{discriminator_forward.1} parent=1 // pred_check_branch
      %33 = sbr.rel (0) target = $region17
    $region16: #{discriminator_forward.1} parent=1 // pred_region
      %s35 = ssub.s32 8192, 8192
      %36 = vsyncadd [#allocation5], %s35
      %s37 = sshll.u32 [#allocation4], 4
      %s38 = int_to_ptr.vmem [resolvable:$true] %s37
      %43 = dma.hbm_to_vmem [thread:$0]  %s3, 8192, %s38, [#allocation5], 128, 128, 8
    $region17: #{discriminator_forward.1} parent=1 // pred_fallthru
      _
    // Predicated region
    $region18: #{discriminator_forward.1} parent=1 // pred_check
      _
    $region19: #{discriminator_forward.1} parent=1 // pred_check_branch
      %45 = sbr.rel (0) target = $region21
    $region20: #{discriminator_forward.1} parent=1 // pred_region
      _
    $region21: #{discriminator_forward.1} parent=1 // pred_fallthru
      _
    // Predicated region
    $region22: #{discriminator_forward.1} parent=1 // pred_check
      _
    $region23: #{discriminator_forward.1} parent=1 // pred_check_branch
      %47 = sbr.rel (0) target = $region25
    $region24: #{discriminator_forward.1} parent=1 // pred_region
      %s49 = ssub.s32 2048, 2048
      %50 = vsyncadd [#allocation5], %s49
      %s51 = sshll.u32 [#allocation6], 4
      %s52 = int_to_ptr.vmem [resolvable:$true] %s51
      %57 = dma.hbm_to_vmem [thread:$0]  %s5, 2048, %s52, [#allocation5], 64, 64, 4
    $region25: #{discriminator_forward.1} parent=1 // pred_fallthru
      _
    // Predicated region
    $region26: #{discriminator_forward.1} parent=1 // pred_check
      _
    $region27: #{discriminator_forward.1} parent=1 // pred_check_branch
      %59 = sbr.rel (0) target = $region29
    $region28: #{discriminator_forward.1} parent=1 // pred_region
      _
    $region29: #{discriminator_forward.1} parent=1 // pred_fallthru
      _
    // Predicated region
    $region30: #{discriminator_forward.1} parent=1 // pred_check
      _
    $region31: #{discriminator_forward.1} parent=1 // pred_check_branch
      %61 = sbr.rel (0) target = $region33
    $region32: #{discriminator_forward.1} parent=1 // pred_region
      %s63 = ssub.s32 1024, 1024
      %64 = vsyncadd [#allocation8], %s63
      %s65 = sshll.u32 [#allocation7], 4
      %s66 = int_to_ptr.vmem [resolvable:$true] %s65
      %71 = dma.hbm_to_vmem [thread:$0]  %s7, 1024, %s66, [#allocation8], 64, 64, 4
    $region33: #{discriminator_forward.1} parent=1 // pred_fallthru
      _
    // Predicated region
    $region34: #{discriminator_forward.1} parent=1 // pred_check
      _
    $region35: #{discriminator_forward.1} parent=1 // pred_check_branch
      %73 = sbr.rel (0) target = $region37
    $region36: #{discriminator_forward.1} parent=1 // pred_region
      %74 = dma.done [#allocation3], 8192
    $region37: #{discriminator_forward.1} parent=1 // pred_fallthru
      _
    // Predicated region
    $region38: #{discriminator_forward.1} parent=1 // pred_check
      _
    $region39: #{discriminator_forward.1} parent=1 // pred_check_branch
      %76 = sbr.rel (0) target = $region41
    $region40: #{discriminator_forward.1} parent=1 // pred_region
      %77 = dma.done [#allocation5], 8192
    $region41: #{discriminator_forward.1} parent=1 // pred_fallthru
      _
    // Predicated region
    $region42: #{discriminator_forward.1} parent=1 // pred_check
      _
    $region43: #{discriminator_forward.1} parent=1 // pred_check_branch
      %79 = sbr.rel (0) target = $region45
    $region44: #{discriminator_forward.1} parent=1 // pred_region
      %80 = dma.done [#allocation5], 2048
    $region45: #{discriminator_forward.1} parent=1 // pred_fallthru
      _
    // Predicated region
    $region46: #{discriminator_forward.1} parent=1 // pred_check
      _
    $region47: #{discriminator_forward.1} parent=1 // pred_check_branch
      %82 = sbr.rel (0) target = $region49
    $region48: #{discriminator_forward.1} parent=1 // pred_region
      %83 = dma.done [#allocation8], 1024
    $region49: #{discriminator_forward.1} parent=1 // pred_fallthru
      _
    %v85 = vld [vmem:[%s0] sm:$0xf]
    %v88 = vunpack.c.l.s4 1983009808
    %v89 = vunpack.c.0.s8 %v88
    %v90 = vlaneseq
    %v91 = vshrl.u32 %v90, 7
    %v92 = vsub.s32 %v89, %v91
    %v93 = vrot.slane %v85, %v92
    %v94 = vcombine.high %v93, %v93
    %v97 = vpack.c.bf16 %v93, %v93
    %v98 = vpack.c.bf16 %v94, %v94
    %v99 = vld [vmem:[#allocation2] sm:$0xff]
    %v100 = vld [vmem:[#allocation2 + $0x8] sm:$0xff]
    %v101 = vld [vmem:[#allocation2 + $0x10] sm:$0xff]
    %v102 = vld [vmem:[#allocation2 + $0x18] sm:$0xff]
    %v103 = vld [vmem:[#allocation2 + $0x20] sm:$0xff]
    %v104 = vld [vmem:[#allocation2 + $0x28] sm:$0xff]
    %v105 = vld [vmem:[#allocation2 + $0x30] sm:$0xff]
    %v106 = vld [vmem:[#allocation2 + $0x38] sm:$0xff]
    %v107 = vld [vmem:[#allocation2 + $0x40] sm:$0xff]
    %v108 = vld [vmem:[#allocation2 + $0x48] sm:$0xff]
    %v109 = vld [vmem:[#allocation2 + $0x50] sm:$0xff]
    %v110 = vld [vmem:[#allocation2 + $0x58] sm:$0xff]
    %v111 = vld [vmem:[#allocation2 + $0x60] sm:$0xff]
    %v112 = vld [vmem:[#allocation2 + $0x68] sm:$0xff]
    %v113 = vld [vmem:[#allocation2 + $0x70] sm:$0xff]
    %v114 = vld [vmem:[#allocation2 + $0x78] sm:$0xff]
    %v115 = vld [vmem:[#allocation2 + $0x80] sm:$0xff]
    %v116 = vld [vmem:[#allocation2 + $0x88] sm:$0xff]
    %v117 = vld [vmem:[#allocation2 + $0x90] sm:$0xff]
    %v118 = vld [vmem:[#allocation2 + $0x98] sm:$0xff]
    %v119 = vld [vmem:[#allocation2 + $0xa0] sm:$0xff]
    %v120 = vld [vmem:[#allocation2 + $0xa8] sm:$0xff]
    %v121 = vld [vmem:[#allocation2 + $0xb0] sm:$0xff]
    %v122 = vld [vmem:[#allocation2 + $0xb8] sm:$0xff]
    %v123 = vld [vmem:[#allocation2 + $0xc0] sm:$0xff]
    %v124 = vld [vmem:[#allocation2 + $0xc8] sm:$0xff]
    %v125 = vld [vmem:[#allocation2 + $0xd0] sm:$0xff]
    %v126 = vld [vmem:[#allocation2 + $0xd8] sm:$0xff]
    %v127 = vld [vmem:[#allocation2 + $0xe0] sm:$0xff]
    %v128 = vld [vmem:[#allocation2 + $0xe8] sm:$0xff]
    %v129 = vld [vmem:[#allocation2 + $0xf0] sm:$0xff]
    %v130 = vld [vmem:[#allocation2 + $0xf8] sm:$0xff]
    %v131 = vld [vmem:[#allocation2 + $0x100] sm:$0xff]
    %v132 = vld [vmem:[#allocation2 + $0x108] sm:$0xff]
    %v133 = vld [vmem:[#allocation2 + $0x110] sm:$0xff]
    %v134 = vld [vmem:[#allocation2 + $0x118] sm:$0xff]
    %v135 = vld [vmem:[#allocation2 + $0x120] sm:$0xff]
    %v136 = vld [vmem:[#allocation2 + $0x128] sm:$0xff]
    %v137 = vld [vmem:[#allocation2 + $0x130] sm:$0xff]
    %v138 = vld [vmem:[#allocation2 + $0x138] sm:$0xff]
    %v139 = vld [vmem:[#allocation2 + $0x140] sm:$0xff]
    %v140 = vld [vmem:[#allocation2 + $0x148] sm:$0xff]
    %v141 = vld [vmem:[#allocation2 + $0x150] sm:$0xff]
    %v142 = vld [vmem:[#allocation2 + $0x158] sm:$0xff]
    %v143 = vld [vmem:[#allocation2 + $0x160] sm:$0xff]
    %v144 = vld [vmem:[#allocation2 + $0x168] sm:$0xff]
    %v145 = vld [vmem:[#allocation2 + $0x170] sm:$0xff]
    %v146 = vld [vmem:[#allocation2 + $0x178] sm:$0xff]
    %v147 = vld [vmem:[#allocation2 + $0x180] sm:$0xff]
    %v148 = vld [vmem:[#allocation2 + $0x188] sm:$0xff]
    %v149 = vld [vmem:[#allocation2 + $0x190] sm:$0xff]
    %v150 = vld [vmem:[#allocation2 + $0x198] sm:$0xff]
    %v151 = vld [vmem:[#allocation2 + $0x1a0] sm:$0xff]
    %v152 = vld [vmem:[#allocation2 + $0x1a8] sm:$0xff]
    %v153 = vld [vmem:[#allocation2 + $0x1b0] sm:$0xff]
    %v154 = vld [vmem:[#allocation2 + $0x1b8] sm:$0xff]
    %v155 = vld [vmem:[#allocation2 + $0x1c0] sm:$0xff]
    %v156 = vld [vmem:[#allocation2 + $0x1c8] sm:$0xff]
    %v157 = vld [vmem:[#allocation2 + $0x1d0] sm:$0xff]
    %v158 = vld [vmem:[#allocation2 + $0x1d8] sm:$0xff]
    %v159 = vld [vmem:[#allocation2 + $0x1e0] sm:$0xff]
    %v160 = vld [vmem:[#allocation2 + $0x1e8] sm:$0xff]
    %v161 = vld [vmem:[#allocation2 + $0x1f0] sm:$0xff]
    %v162 = vld [vmem:[#allocation2 + $0x1f8] sm:$0xff]
    %v163 = vld [vmem:[%s2] sm:$0xf]
    %v165 = vlaneseq
    %v166 = vshrl.u32 %v165, 7
    %v167 = vsub.s32 0, %v166
    %v168 = vrot.slane %v163, %v167
    %v169 = vlaneseq
    %v170 = vshrl.u32 %v169, 7
    %v171 = vsub.s32 1, %v170
    %v172 = vrot.slane %v163, %v171
    %v173 = vlaneseq
    %v174 = vshrl.u32 %v173, 7
    %v175 = vsub.s32 2, %v174
    %v176 = vrot.slane %v163, %v175
    %v177 = vlaneseq
    %v178 = vshrl.u32 %v177, 7
    %v179 = vsub.s32 3, %v178
    %v180 = vrot.slane %v163, %v179
    %v249 = vunpack.c.l.b16 %v99
    %v250 = vunpack.c.h.b16 %v99
    %v251 = vunpack.c.l.b16 %v100
    %v252 = vunpack.c.h.b16 %v100
    %v253 = vunpack.c.l.b16 %v101
    %v254 = vunpack.c.h.b16 %v101
    %v255 = vunpack.c.l.b16 %v102
    %v256 = vunpack.c.h.b16 %v102
    %v257 = vunpack.c.l.b16 %v103
    %v258 = vunpack.c.h.b16 %v103
    %v259 = vunpack.c.l.b16 %v104
    %v260 = vunpack.c.h.b16 %v104
    %v261 = vunpack.c.l.b16 %v105
    %v262 = vunpack.c.h.b16 %v105
    %v263 = vunpack.c.l.b16 %v106
    %v264 = vunpack.c.h.b16 %v106
    %v265 = vunpack.c.l.b16 %v107
    %v266 = vunpack.c.h.b16 %v107
    %v267 = vunpack.c.l.b16 %v108
    %v268 = vunpack.c.h.b16 %v108
    %v269 = vunpack.c.l.b16 %v109
    %v270 = vunpack.c.h.b16 %v109
    %v271 = vunpack.c.l.b16 %v110
    %v272 = vunpack.c.h.b16 %v110
    %v273 = vunpack.c.l.b16 %v111
    %v274 = vunpack.c.h.b16 %v111
    %v275 = vunpack.c.l.b16 %v112
    %v276 = vunpack.c.h.b16 %v112
    %v277 = vunpack.c.l.b16 %v113
    %v278 = vunpack.c.h.b16 %v113
    %v279 = vunpack.c.l.b16 %v114
    %v280 = vunpack.c.h.b16 %v114
    %v281 = vunpack.c.l.b16 %v115
    %v282 = vunpack.c.h.b16 %v115
    %v283 = vunpack.c.l.b16 %v116
    %v284 = vunpack.c.h.b16 %v116
    %v285 = vunpack.c.l.b16 %v117
    %v286 = vunpack.c.h.b16 %v117
    %v287 = vunpack.c.l.b16 %v118
    %v288 = vunpack.c.h.b16 %v118
    %v289 = vunpack.c.l.b16 %v119
    %v290 = vunpack.c.h.b16 %v119
    %v291 = vunpack.c.l.b16 %v120
    %v292 = vunpack.c.h.b16 %v120
    %v293 = vunpack.c.l.b16 %v121
    %v294 = vunpack.c.h.b16 %v121
    %v295 = vunpack.c.l.b16 %v122
    %v296 = vunpack.c.h.b16 %v122
    %v297 = vunpack.c.l.b16 %v123
    %v298 = vunpack.c.h.b16 %v123
    %v299 = vunpack.c.l.b16 %v124
    %v300 = vunpack.c.h.b16 %v124
    %v301 = vunpack.c.l.b16 %v125
    %v302 = vunpack.c.h.b16 %v125
    %v303 = vunpack.c.l.b16 %v126
    %v304 = vunpack.c.h.b16 %v126
    %v305 = vunpack.c.l.b16 %v127
    %v306 = vunpack.c.h.b16 %v127
    %v307 = vunpack.c.l.b16 %v128
    %v308 = vunpack.c.h.b16 %v128
    %v309 = vunpack.c.l.b16 %v129
    %v310 = vunpack.c.h.b16 %v129
    %v311 = vunpack.c.l.b16 %v130
    %v312 = vunpack.c.h.b16 %v130
    %v313 = vunpack.c.l.b16 %v131
    %v314 = vunpack.c.h.b16 %v131
    %v315 = vunpack.c.l.b16 %v132
    %v316 = vunpack.c.h.b16 %v132
    %v317 = vunpack.c.l.b16 %v133
    %v318 = vunpack.c.h.b16 %v133
    %v319 = vunpack.c.l.b16 %v134
    %v320 = vunpack.c.h.b16 %v134
    %v321 = vunpack.c.l.b16 %v135
    %v322 = vunpack.c.h.b16 %v135
    %v323 = vunpack.c.l.b16 %v136
    %v324 = vunpack.c.h.b16 %v136
    %v325 = vunpack.c.l.b16 %v137
    %v326 = vunpack.c.h.b16 %v137
    %v327 = vunpack.c.l.b16 %v138
    %v328 = vunpack.c.h.b16 %v138
    %v329 = vunpack.c.l.b16 %v139
    %v330 = vunpack.c.h.b16 %v139
    %v331 = vunpack.c.l.b16 %v140
    %v332 = vunpack.c.h.b16 %v140
    %v333 = vunpack.c.l.b16 %v141
    %v334 = vunpack.c.h.b16 %v141
    %v335 = vunpack.c.l.b16 %v142
    %v336 = vunpack.c.h.b16 %v142
    %v337 = vunpack.c.l.b16 %v143
    %v338 = vunpack.c.h.b16 %v143
    %v339 = vunpack.c.l.b16 %v144
    %v340 = vunpack.c.h.b16 %v144
    %v341 = vunpack.c.l.b16 %v145
    %v342 = vunpack.c.h.b16 %v145
    %v343 = vunpack.c.l.b16 %v146
    %v344 = vunpack.c.h.b16 %v146
    %v345 = vunpack.c.l.b16 %v147
    %v346 = vunpack.c.h.b16 %v147
    %v347 = vunpack.c.l.b16 %v148
    %v348 = vunpack.c.h.b16 %v148
    %v349 = vunpack.c.l.b16 %v149
    %v350 = vunpack.c.h.b16 %v149
    %v351 = vunpack.c.l.b16 %v150
    %v352 = vunpack.c.h.b16 %v150
    %v353 = vunpack.c.l.b16 %v151
    %v354 = vunpack.c.h.b16 %v151
    %v355 = vunpack.c.l.b16 %v152
    %v356 = vunpack.c.h.b16 %v152
    %v357 = vunpack.c.l.b16 %v153
    %v358 = vunpack.c.h.b16 %v153
    %v359 = vunpack.c.l.b16 %v154
    %v360 = vunpack.c.h.b16 %v154
    %v361 = vunpack.c.l.b16 %v155
    %v362 = vunpack.c.h.b16 %v155
    %v363 = vunpack.c.l.b16 %v156
    %v364 = vunpack.c.h.b16 %v156
    %v365 = vunpack.c.l.b16 %v157
    %v366 = vunpack.c.h.b16 %v157
    %v367 = vunpack.c.l.b16 %v158
    %v368 = vunpack.c.h.b16 %v158
    %v369 = vunpack.c.l.b16 %v159
    %v370 = vunpack.c.h.b16 %v159
    %v371 = vunpack.c.l.b16 %v160
    %v372 = vunpack.c.h.b16 %v160
    %v373 = vunpack.c.l.b16 %v161
    %v374 = vunpack.c.h.b16 %v161
    %v375 = vunpack.c.l.b16 %v162
    %v376 = vunpack.c.h.b16 %v162
    %v377 = vpack.c.b16 %v253, %v249
    %v378 = vpack.c.b16 %v254, %v250
    %v379 = vpack.c.b16 %v255, %v251
    %v380 = vpack.c.b16 %v256, %v252
    %v381 = vpack.c.b16 %v261, %v257
    %v382 = vpack.c.b16 %v262, %v258
    %v383 = vpack.c.b16 %v263, %v259
    %v384 = vpack.c.b16 %v264, %v260
    %v385 = vpack.c.b16 %v269, %v265
    %v386 = vpack.c.b16 %v270, %v266
    %v387 = vpack.c.b16 %v271, %v267
    %v388 = vpack.c.b16 %v272, %v268
    %v389 = vpack.c.b16 %v277, %v273
    %v390 = vpack.c.b16 %v278, %v274
    %v391 = vpack.c.b16 %v279, %v275
    %v392 = vpack.c.b16 %v280, %v276
    %v393 = vpack.c.b16 %v285, %v281
    %v394 = vpack.c.b16 %v286, %v282
    %v395 = vpack.c.b16 %v287, %v283
    %v396 = vpack.c.b16 %v288, %v284
    %v397 = vpack.c.b16 %v293, %v289
    %v398 = vpack.c.b16 %v294, %v290
    %v399 = vpack.c.b16 %v295, %v291
    %v400 = vpack.c.b16 %v296, %v292
    %v401 = vpack.c.b16 %v301, %v297
    %v402 = vpack.c.b16 %v302, %v298
    %v403 = vpack.c.b16 %v303, %v299
    %v404 = vpack.c.b16 %v304, %v300
    %v405 = vpack.c.b16 %v309, %v305
    %v406 = vpack.c.b16 %v310, %v306
    %v407 = vpack.c.b16 %v311, %v307
    %v408 = vpack.c.b16 %v312, %v308
    %v409 = vpack.c.b16 %v317, %v313
    %v410 = vpack.c.b16 %v318, %v314
    %v411 = vpack.c.b16 %v319, %v315
    %v412 = vpack.c.b16 %v320, %v316
    %v413 = vpack.c.b16 %v325, %v321
    %v414 = vpack.c.b16 %v326, %v322
    %v415 = vpack.c.b16 %v327, %v323
    %v416 = vpack.c.b16 %v328, %v324
    %v417 = vpack.c.b16 %v333, %v329
    %v418 = vpack.c.b16 %v334, %v330
    %v419 = vpack.c.b16 %v335, %v331
    %v420 = vpack.c.b16 %v336, %v332
    %v421 = vpack.c.b16 %v341, %v337
    %v422 = vpack.c.b16 %v342, %v338
    %v423 = vpack.c.b16 %v343, %v339
    %v424 = vpack.c.b16 %v344, %v340
    %v425 = vpack.c.b16 %v349, %v345
    %v426 = vpack.c.b16 %v350, %v346
    %v427 = vpack.c.b16 %v351, %v347
    %v428 = vpack.c.b16 %v352, %v348
    %v429 = vpack.c.b16 %v357, %v353
    %v430 = vpack.c.b16 %v358, %v354
    %v431 = vpack.c.b16 %v359, %v355
    %v432 = vpack.c.b16 %v360, %v356
    %v433 = vpack.c.b16 %v365, %v361
    %v434 = vpack.c.b16 %v366, %v362
    %v435 = vpack.c.b16 %v367, %v363
    %v436 = vpack.c.b16 %v368, %v364
    %v437 = vpack.c.b16 %v373, %v369
    %v438 = vpack.c.b16 %v374, %v370
    %v439 = vpack.c.b16 %v375, %v371
    %v440 = vpack.c.b16 %v376, %v372
    %505 = vmatprep.subr.bf16.mxu0 %v406
    %506 = vmatpush1.bf16.msra.mxu0 %v405
    %507 = vmatprep.subr.bf16.mxu0 %v402
    %508 = vmatpush1.bf16.msra.mxu0 %v401
    %509 = vmatprep.subr.bf16.mxu0 %v398
    %510 = vmatpush1.bf16.msra.mxu0 %v397
    %511 = vmatprep.subr.bf16.mxu0 %v394
    %512 = vmatpush1.bf16.msra.mxu0 %v393
    %513 = vmatprep.subr.bf16.mxu0 %v390
    %514 = vmatpush1.bf16.msra.mxu0 %v389
    %515 = vmatprep.subr.bf16.mxu0 %v386
    %516 = vmatpush1.bf16.msra.mxu0 %v385
    %517 = vmatprep.subr.bf16.mxu0 %v382
    %518 = vmatpush1.bf16.msra.mxu0 %v381
    %519 = vmatprep.subr.bf16.mxu0 %v378
    %520 = vmatpush1.bf16.msra.mxu0 %v377
    %521 = vmatprep.subr.bf16.mxu0 %v438
    %522 = vmatpush2.bf16.msra.mxu0 %v437
    %523 = vmatprep.subr.bf16.mxu0 %v434
    %524 = vmatpush2.bf16.msra.mxu0 %v433
    %525 = vmatprep.subr.bf16.mxu0 %v430
    %526 = vmatpush2.bf16.msra.mxu0 %v429
    %527 = vmatprep.subr.bf16.mxu0 %v426
    %528 = vmatpush2.bf16.msra.mxu0 %v425
    %529 = vmatprep.subr.bf16.mxu0 %v422
    %530 = vmatpush2.bf16.msra.mxu0 %v421
    %531 = vmatprep.subr.bf16.mxu0 %v418
    %532 = vmatpush2.bf16.msra.mxu0 %v417
    %533 = vmatprep.subr.bf16.mxu0 %v414
    %534 = vmatpush2.bf16.msra.mxu0 %v413
    %535 = vmatprep.subr.bf16.mxu0 %v410
    %536 = vmatpush2.bf16.msra.mxu0 %v409
    %537 = vmatprep.mubr.bf16.mxu0 %v98
    %538 = vmatmul.mubr.bf16.gmra.mxu0 %v97
    %v539 = vpop.f32.mrf.mxu0
    %v540 = vadd.f32 %v168, %v539
    %v541 = vpop.f32.mrf.mxu0
    %v542 = vadd.f32 %v172, %v541
    %v543 = vpop.f32.mrf.mxu0
    %v544 = vpop.f32.mrf.mxu0
    %545 = vdwg.mxu0
    %546 = vmatprep.subr.bf16.mxu0 %v408
    %547 = vmatpush1.bf16.msra.mxu0 %v407
    %548 = vmatprep.subr.bf16.mxu0 %v404
    %549 = vmatpush1.bf16.msra.mxu0 %v403
    %550 = vmatprep.subr.bf16.mxu0 %v400
    %551 = vmatpush1.bf16.msra.mxu0 %v399
    %552 = vmatprep.subr.bf16.mxu0 %v396
    %553 = vmatpush1.bf16.msra.mxu0 %v395
    %554 = vmatprep.subr.bf16.mxu0 %v392
    %555 = vmatpush1.bf16.msra.mxu0 %v391
    %556 = vmatprep.subr.bf16.mxu0 %v388
    %557 = vmatpush1.bf16.msra.mxu0 %v387
    %558 = vmatprep.subr.bf16.mxu0 %v384
    %559 = vmatpush1.bf16.msra.mxu0 %v383
    %560 = vmatprep.subr.bf16.mxu0 %v380
    %561 = vmatpush1.bf16.msra.mxu0 %v379
    %562 = vmatprep.subr.bf16.mxu0 %v440
    %563 = vmatpush2.bf16.msra.mxu0 %v439
    %564 = vmatprep.subr.bf16.mxu0 %v436
    %565 = vmatpush2.bf16.msra.mxu0 %v435
    %566 = vmatprep.subr.bf16.mxu0 %v432
    %567 = vmatpush2.bf16.msra.mxu0 %v431
    %568 = vmatprep.subr.bf16.mxu0 %v428
    %569 = vmatpush2.bf16.msra.mxu0 %v427
    %570 = vmatprep.subr.bf16.mxu0 %v424
    %571 = vmatpush2.bf16.msra.mxu0 %v423
    %572 = vmatprep.subr.bf16.mxu0 %v420
    %573 = vmatpush2.bf16.msra.mxu0 %v419
    %574 = vmatprep.subr.bf16.mxu0 %v416
    %575 = vmatpush2.bf16.msra.mxu0 %v415
    %576 = vmatprep.subr.bf16.mxu0 %v412
    %577 = vmatpush2.bf16.msra.mxu0 %v411
    %578 = vmatprep.mubr.bf16.mxu0 %v98
    %579 = vmatmul.mubr.bf16.gmra.mxu0 %v97
    %v580 = vpop.f32.mrf.mxu0
    %v581 = vadd.f32 %v176, %v580
    %v582 = vpop.f32.mrf.mxu0
    %v583 = vadd.f32 %v180, %v582
    %v584 = vpop.f32.mrf.mxu0
    %v585 = vpop.f32.mrf.mxu0
    %586 = vdwg.mxu0
    %vm587 = vcmp.ge.f32.partialorder %v540, 0.0
    %vm588 = vcmp.ge.f32.partialorder %v542, 0.0
    %vm589 = vcmp.ge.f32.partialorder %v581, 0.0
    %vm590 = vcmp.ge.f32.partialorder %v583, 0.0
    %v591 = vmul.f32 %v540, 0.001
    %v592 = vmul.f32 %v542, 0.001
    %v593 = vmul.f32 %v581, 0.001
    %v594 = vmul.f32 %v583, 0.001
    %v595 = vsel %vm587, %v540, %v591
    %v596 = vsel %vm588, %v542, %v592
    %v597 = vsel %vm589, %v581, %v593
    %v598 = vsel %vm590, %v583, %v594
    %v599 = vpack.c.bf16 %v595, %v595
    %v600 = vpack.c.bf16 %v596, %v596
    %v601 = vpack.c.bf16 %v597, %v597
    %v602 = vpack.c.bf16 %v598, %v598
    %v603 = vld [vmem:[#allocation4] sm:$0xff]
    %v604 = vld [vmem:[#allocation4 + $0x8] sm:$0xff]
    %v605 = vld [vmem:[#allocation4 + $0x10] sm:$0xff]
    %v606 = vld [vmem:[#allocation4 + $0x18] sm:$0xff]
    %v607 = vld [vmem:[#allocation4 + $0x20] sm:$0xff]
    %v608 = vld [vmem:[#allocation4 + $0x28] sm:$0xff]
    %v609 = vld [vmem:[#allocation4 + $0x30] sm:$0xff]
    %v610 = vld [vmem:[#allocation4 + $0x38] sm:$0xff]
    %v611 = vld [vmem:[#allocation4 + $0x40] sm:$0xff]
    %v612 = vld [vmem:[#allocation4 + $0x48] sm:$0xff]
    %v613 = vld [vmem:[#allocation4 + $0x50] sm:$0xff]
    %v614 = vld [vmem:[#allocation4 + $0x58] sm:$0xff]
    %v615 = vld [vmem:[#allocation4 + $0x60] sm:$0xff]
    %v616 = vld [vmem:[#allocation4 + $0x68] sm:$0xff]
    %v617 = vld [vmem:[#allocation4 + $0x70] sm:$0xff]
    %v618 = vld [vmem:[#allocation4 + $0x78] sm:$0xff]
    %v619 = vld [vmem:[#allocation4 + $0x80] sm:$0xff]
    %v620 = vld [vmem:[#allocation4 + $0x88] sm:$0xff]
    %v621 = vld [vmem:[#allocation4 + $0x90] sm:$0xff]
    %v622 = vld [vmem:[#allocation4 + $0x98] sm:$0xff]
    %v623 = vld [vmem:[#allocation4 + $0xa0] sm:$0xff]
    %v624 = vld [vmem:[#allocation4 + $0xa8] sm:$0xff]
    %v625 = vld [vmem:[#allocation4 + $0xb0] sm:$0xff]
    %v626 = vld [vmem:[#allocation4 + $0xb8] sm:$0xff]
    %v627 = vld [vmem:[#allocation4 + $0xc0] sm:$0xff]
    %v628 = vld [vmem:[#allocation4 + $0xc8] sm:$0xff]
    %v629 = vld [vmem:[#allocation4 + $0xd0] sm:$0xff]
    %v630 = vld [vmem:[#allocation4 + $0xd8] sm:$0xff]
    %v631 = vld [vmem:[#allocation4 + $0xe0] sm:$0xff]
    %v632 = vld [vmem:[#allocation4 + $0xe8] sm:$0xff]
    %v633 = vld [vmem:[#allocation4 + $0xf0] sm:$0xff]
    %v634 = vld [vmem:[#allocation4 + $0xf8] sm:$0xff]
    %v635 = vld [vmem:[#allocation4 + $0x100] sm:$0xff]
    %v636 = vld [vmem:[#allocation4 + $0x108] sm:$0xff]
    %v637 = vld [vmem:[#allocation4 + $0x110] sm:$0xff]
    %v638 = vld [vmem:[#allocation4 + $0x118] sm:$0xff]
    %v639 = vld [vmem:[#allocation4 + $0x120] sm:$0xff]
    %v640 = vld [vmem:[#allocation4 + $0x128] sm:$0xff]
    %v641 = vld [vmem:[#allocation4 + $0x130] sm:$0xff]
    %v642 = vld [vmem:[#allocation4 + $0x138] sm:$0xff]
    %v643 = vld [vmem:[#allocation4 + $0x140] sm:$0xff]
    %v644 = vld [vmem:[#allocation4 + $0x148] sm:$0xff]
    %v645 = vld [vmem:[#allocation4 + $0x150] sm:$0xff]
    %v646 = vld [vmem:[#allocation4 + $0x158] sm:$0xff]
    %v647 = vld [vmem:[#allocation4 + $0x160] sm:$0xff]
    %v648 = vld [vmem:[#allocation4 + $0x168] sm:$0xff]
    %v649 = vld [vmem:[#allocation4 + $0x170] sm:$0xff]
    %v650 = vld [vmem:[#allocation4 + $0x178] sm:$0xff]
    %v651 = vld [vmem:[#allocation4 + $0x180] sm:$0xff]
    %v652 = vld [vmem:[#allocation4 + $0x188] sm:$0xff]
    %v653 = vld [vmem:[#allocation4 + $0x190] sm:$0xff]
    %v654 = vld [vmem:[#allocation4 + $0x198] sm:$0xff]
    %v655 = vld [vmem:[#allocation4 + $0x1a0] sm:$0xff]
    %v656 = vld [vmem:[#allocation4 + $0x1a8] sm:$0xff]
    %v657 = vld [vmem:[#allocation4 + $0x1b0] sm:$0xff]
    %v658 = vld [vmem:[#allocation4 + $0x1b8] sm:$0xff]
    %v659 = vld [vmem:[#allocation4 + $0x1c0] sm:$0xff]
    %v660 = vld [vmem:[#allocation4 + $0x1c8] sm:$0xff]
    %v661 = vld [vmem:[#allocation4 + $0x1d0] sm:$0xff]
    %v662 = vld [vmem:[#allocation4 + $0x1d8] sm:$0xff]
    %v663 = vld [vmem:[#allocation4 + $0x1e0] sm:$0xff]
    %v664 = vld [vmem:[#allocation4 + $0x1e8] sm:$0xff]
    %v665 = vld [vmem:[#allocation4 + $0x1f0] sm:$0xff]
    %v666 = vld [vmem:[#allocation4 + $0x1f8] sm:$0xff]
    %v667 = vld [vmem:[%s4] sm:$0x3]
    %v669 = vlaneseq
    %v670 = vshrl.u32 %v669, 7
    %v671 = vsub.s32 0, %v670
    %v672 = vrot.slane %v667, %v671
    %v673 = vlaneseq
    %v674 = vshrl.u32 %v673, 7
    %v675 = vsub.s32 1, %v674
    %v676 = vrot.slane %v667, %v675
    %v743 = vunpack.c.l.b16 %v603
    %v744 = vunpack.c.h.b16 %v603
    %v745 = vunpack.c.l.b16 %v604
    %v746 = vunpack.c.h.b16 %v604
    %v747 = vunpack.c.l.b16 %v605
    %v748 = vunpack.c.h.b16 %v605
    %v749 = vunpack.c.l.b16 %v606
    %v750 = vunpack.c.h.b16 %v606
    %v751 = vunpack.c.l.b16 %v607
    %v752 = vunpack.c.h.b16 %v607
    %v753 = vunpack.c.l.b16 %v608
    %v754 = vunpack.c.h.b16 %v608
    %v755 = vunpack.c.l.b16 %v609
    %v756 = vunpack.c.h.b16 %v609
    %v757 = vunpack.c.l.b16 %v610
    %v758 = vunpack.c.h.b16 %v610
    %v759 = vunpack.c.l.b16 %v611
    %v760 = vunpack.c.h.b16 %v611
    %v761 = vunpack.c.l.b16 %v612
    %v762 = vunpack.c.h.b16 %v612
    %v763 = vunpack.c.l.b16 %v613
    %v764 = vunpack.c.h.b16 %v613
    %v765 = vunpack.c.l.b16 %v614
    %v766 = vunpack.c.h.b16 %v614
    %v767 = vunpack.c.l.b16 %v615
    %v768 = vunpack.c.h.b16 %v615
    %v769 = vunpack.c.l.b16 %v616
    %v770 = vunpack.c.h.b16 %v616
    %v771 = vunpack.c.l.b16 %v617
    %v772 = vunpack.c.h.b16 %v617
    %v773 = vunpack.c.l.b16 %v618
    %v774 = vunpack.c.h.b16 %v618
    %v775 = vunpack.c.l.b16 %v619
    %v776 = vunpack.c.h.b16 %v619
    %v777 = vunpack.c.l.b16 %v620
    %v778 = vunpack.c.h.b16 %v620
    %v779 = vunpack.c.l.b16 %v621
    %v780 = vunpack.c.h.b16 %v621
    %v781 = vunpack.c.l.b16 %v622
    %v782 = vunpack.c.h.b16 %v622
    %v783 = vunpack.c.l.b16 %v623
    %v784 = vunpack.c.h.b16 %v623
    %v785 = vunpack.c.l.b16 %v624
    %v786 = vunpack.c.h.b16 %v624
    %v787 = vunpack.c.l.b16 %v625
    %v788 = vunpack.c.h.b16 %v625
    %v789 = vunpack.c.l.b16 %v626
    %v790 = vunpack.c.h.b16 %v626
    %v791 = vunpack.c.l.b16 %v627
    %v792 = vunpack.c.h.b16 %v627
    %v793 = vunpack.c.l.b16 %v628
    %v794 = vunpack.c.h.b16 %v628
    %v795 = vunpack.c.l.b16 %v629
    %v796 = vunpack.c.h.b16 %v629
    %v797 = vunpack.c.l.b16 %v630
    %v798 = vunpack.c.h.b16 %v630
    %v799 = vunpack.c.l.b16 %v631
    %v800 = vunpack.c.h.b16 %v631
    %v801 = vunpack.c.l.b16 %v632
    %v802 = vunpack.c.h.b16 %v632
    %v803 = vunpack.c.l.b16 %v633
    %v804 = vunpack.c.h.b16 %v633
    %v805 = vunpack.c.l.b16 %v634
    %v806 = vunpack.c.h.b16 %v634
    %v807 = vunpack.c.l.b16 %v635
    %v808 = vunpack.c.h.b16 %v635
    %v809 = vunpack.c.l.b16 %v636
    %v810 = vunpack.c.h.b16 %v636
    %v811 = vunpack.c.l.b16 %v637
    %v812 = vunpack.c.h.b16 %v637
    %v813 = vunpack.c.l.b16 %v638
    %v814 = vunpack.c.h.b16 %v638
    %v815 = vunpack.c.l.b16 %v639
    %v816 = vunpack.c.h.b16 %v639
    %v817 = vunpack.c.l.b16 %v640
    %v818 = vunpack.c.h.b16 %v640
    %v819 = vunpack.c.l.b16 %v641
    %v820 = vunpack.c.h.b16 %v641
    %v821 = vunpack.c.l.b16 %v642
    %v822 = vunpack.c.h.b16 %v642
    %v823 = vunpack.c.l.b16 %v643
    %v824 = vunpack.c.h.b16 %v643
    %v825 = vunpack.c.l.b16 %v644
    %v826 = vunpack.c.h.b16 %v644
    %v827 = vunpack.c.l.b16 %v645
    %v828 = vunpack.c.h.b16 %v645
    %v829 = vunpack.c.l.b16 %v646
    %v830 = vunpack.c.h.b16 %v646
    %v831 = vunpack.c.l.b16 %v647
    %v832 = vunpack.c.h.b16 %v647
    %v833 = vunpack.c.l.b16 %v648
    %v834 = vunpack.c.h.b16 %v648
    %v835 = vunpack.c.l.b16 %v649
    %v836 = vunpack.c.h.b16 %v649
    %v837 = vunpack.c.l.b16 %v650
    %v838 = vunpack.c.h.b16 %v650
    %v839 = vunpack.c.l.b16 %v651
    %v840 = vunpack.c.h.b16 %v651
    %v841 = vunpack.c.l.b16 %v652
    %v842 = vunpack.c.h.b16 %v652
    %v843 = vunpack.c.l.b16 %v653
    %v844 = vunpack.c.h.b16 %v653
    %v845 = vunpack.c.l.b16 %v654
    %v846 = vunpack.c.h.b16 %v654
    %v847 = vunpack.c.l.b16 %v655
    %v848 = vunpack.c.h.b16 %v655
    %v849 = vunpack.c.l.b16 %v656
    %v850 = vunpack.c.h.b16 %v656
    %v851 = vunpack.c.l.b16 %v657
    %v852 = vunpack.c.h.b16 %v657
    %v853 = vunpack.c.l.b16 %v658
    %v854 = vunpack.c.h.b16 %v658
    %v855 = vunpack.c.l.b16 %v659
    %v856 = vunpack.c.h.b16 %v659
    %v857 = vunpack.c.l.b16 %v660
    %v858 = vunpack.c.h.b16 %v660
    %v859 = vunpack.c.l.b16 %v661
    %v860 = vunpack.c.h.b16 %v661
    %v861 = vunpack.c.l.b16 %v662
    %v862 = vunpack.c.h.b16 %v662
    %v863 = vunpack.c.l.b16 %v663
    %v864 = vunpack.c.h.b16 %v663
    %v865 = vunpack.c.l.b16 %v664
    %v866 = vunpack.c.h.b16 %v664
    %v867 = vunpack.c.l.b16 %v665
    %v868 = vunpack.c.h.b16 %v665
    %v869 = vunpack.c.l.b16 %v666
    %v870 = vunpack.c.h.b16 %v666
    %v871 = vpack.c.b16 %v745, %v743
    %v872 = vpack.c.b16 %v746, %v744
    %v873 = vpack.c.b16 %v749, %v747
    %v874 = vpack.c.b16 %v750, %v748
    %v875 = vpack.c.b16 %v753, %v751
    %v876 = vpack.c.b16 %v754, %v752
    %v877 = vpack.c.b16 %v757, %v755
    %v878 = vpack.c.b16 %v758, %v756
    %v879 = vpack.c.b16 %v761, %v759
    %v880 = vpack.c.b16 %v762, %v760
    %v881 = vpack.c.b16 %v765, %v763
    %v882 = vpack.c.b16 %v766, %v764
    %v883 = vpack.c.b16 %v769, %v767
    %v884 = vpack.c.b16 %v770, %v768
    %v885 = vpack.c.b16 %v773, %v771
    %v886 = vpack.c.b16 %v774, %v772
    %v887 = vpack.c.b16 %v777, %v775
    %v888 = vpack.c.b16 %v778, %v776
    %v889 = vpack.c.b16 %v781, %v779
    %v890 = vpack.c.b16 %v782, %v780
    %v891 = vpack.c.b16 %v785, %v783
    %v892 = vpack.c.b16 %v786, %v784
    %v893 = vpack.c.b16 %v789, %v787
    %v894 = vpack.c.b16 %v790, %v788
    %v895 = vpack.c.b16 %v793, %v791
    %v896 = vpack.c.b16 %v794, %v792
    %v897 = vpack.c.b16 %v797, %v795
    %v898 = vpack.c.b16 %v798, %v796
    %v899 = vpack.c.b16 %v801, %v799
    %v900 = vpack.c.b16 %v802, %v800
    %v901 = vpack.c.b16 %v805, %v803
    %v902 = vpack.c.b16 %v806, %v804
    %v903 = vpack.c.b16 %v809, %v807
    %v904 = vpack.c.b16 %v810, %v808
    %v905 = vpack.c.b16 %v813, %v811
    %v906 = vpack.c.b16 %v814, %v812
    %v907 = vpack.c.b16 %v817, %v815
    %v908 = vpack.c.b16 %v818, %v816
    %v909 = vpack.c.b16 %v821, %v819
    %v910 = vpack.c.b16 %v822, %v820
    %v911 = vpack.c.b16 %v825, %v823
    %v912 = vpack.c.b16 %v826, %v824
    %v913 = vpack.c.b16 %v829, %v827
    %v914 = vpack.c.b16 %v830, %v828
    %v915 = vpack.c.b16 %v833, %v831
    %v916 = vpack.c.b16 %v834, %v832
    %v917 = vpack.c.b16 %v837, %v835
    %v918 = vpack.c.b16 %v838, %v836
    %v919 = vpack.c.b16 %v841, %v839
    %v920 = vpack.c.b16 %v842, %v840
    %v921 = vpack.c.b16 %v845, %v843
    %v922 = vpack.c.b16 %v846, %v844
    %v923 = vpack.c.b16 %v849, %v847
    %v924 = vpack.c.b16 %v850, %v848
    %v925 = vpack.c.b16 %v853, %v851
    %v926 = vpack.c.b16 %v854, %v852
    %v927 = vpack.c.b16 %v857, %v855
    %v928 = vpack.c.b16 %v858, %v856
    %v929 = vpack.c.b16 %v861, %v859
    %v930 = vpack.c.b16 %v862, %v860
    %v931 = vpack.c.b16 %v865, %v863
    %v932 = vpack.c.b16 %v866, %v864
    %v933 = vpack.c.b16 %v869, %v867
    %v934 = vpack.c.b16 %v870, %v868
    %999 = vmatprep.subr.bf16.mxu0 %v886
    %1000 = vmatpush1.bf16.msra.mxu0 %v885
    %1001 = vmatprep.subr.bf16.mxu0 %v884
    %1002 = vmatpush1.bf16.msra.mxu0 %v883
    %1003 = vmatprep.subr.bf16.mxu0 %v882
    %1004 = vmatpush1.bf16.msra.mxu0 %v881
    %1005 = vmatprep.subr.bf16.mxu0 %v880
    %1006 = vmatpush1.bf16.msra.mxu0 %v879
    %1007 = vmatprep.subr.bf16.mxu0 %v878
    %1008 = vmatpush1.bf16.msra.mxu0 %v877
    %1009 = vmatprep.subr.bf16.mxu0 %v876
    %1010 = vmatpush1.bf16.msra.mxu0 %v875
    %1011 = vmatprep.subr.bf16.mxu0 %v874
    %1012 = vmatpush1.bf16.msra.mxu0 %v873
    %1013 = vmatprep.subr.bf16.mxu0 %v872
    %1014 = vmatpush1.bf16.msra.mxu0 %v871
    %1015 = vmatprep.subr.bf16.mxu0 %v902
    %1016 = vmatpush2.bf16.msra.mxu0 %v901
    %1017 = vmatprep.subr.bf16.mxu0 %v900
    %1018 = vmatpush2.bf16.msra.mxu0 %v899
    %1019 = vmatprep.subr.bf16.mxu0 %v898
    %1020 = vmatpush2.bf16.msra.mxu0 %v897
    %1021 = vmatprep.subr.bf16.mxu0 %v896
    %1022 = vmatpush2.bf16.msra.mxu0 %v895
    %1023 = vmatprep.subr.bf16.mxu0 %v894
    %1024 = vmatpush2.bf16.msra.mxu0 %v893
    %1025 = vmatprep.subr.bf16.mxu0 %v892
    %1026 = vmatpush2.bf16.msra.mxu0 %v891
    %1027 = vmatprep.subr.bf16.mxu0 %v890
    %1028 = vmatpush2.bf16.msra.mxu0 %v889
    %1029 = vmatprep.subr.bf16.mxu0 %v888
    %1030 = vmatpush2.bf16.msra.mxu0 %v887
    %1031 = vmatprep.mubr.bf16.mxu0 %v600
    %1032 = vmatmul.mubr.bf16.gmra.mxu0 %v599
    %v1033 = vpop.f32.mrf.mxu0
    %v1034 = vadd.f32 %v672, %v1033
    %v1035 = vpop.f32.mrf.mxu0
    %v1036 = vadd.f32 %v676, %v1035
    %v1037 = vpop.f32.mrf.mxu0
    %v1038 = vpop.f32.mrf.mxu0
    %1039 = vdwg.mxu0
    %1040 = vmatprep.subr.bf16.mxu0 %v918
    %1041 = vmatpush1.bf16.msra.mxu0 %v917
    %1042 = vmatprep.subr.bf16.mxu0 %v916
    %1043 = vmatpush1.bf16.msra.mxu0 %v915
    %1044 = vmatprep.subr.bf16.mxu0 %v914
    %1045 = vmatpush1.bf16.msra.mxu0 %v913
    %1046 = vmatprep.subr.bf16.mxu0 %v912
    %1047 = vmatpush1.bf16.msra.mxu0 %v911
    %1048 = vmatprep.subr.bf16.mxu0 %v910
    %1049 = vmatpush1.bf16.msra.mxu0 %v909
    %1050 = vmatprep.subr.bf16.mxu0 %v908
    %1051 = vmatpush1.bf16.msra.mxu0 %v907
    %1052 = vmatprep.subr.bf16.mxu0 %v906
    %1053 = vmatpush1.bf16.msra.mxu0 %v905
    %1054 = vmatprep.subr.bf16.mxu0 %v904
    %1055 = vmatpush1.bf16.msra.mxu0 %v903
    %1056 = vmatprep.subr.bf16.mxu0 %v934
    %1057 = vmatpush2.bf16.msra.mxu0 %v933
    %1058 = vmatprep.subr.bf16.mxu0 %v932
    %1059 = vmatpush2.bf16.msra.mxu0 %v931
    %1060 = vmatprep.subr.bf16.mxu0 %v930
    %1061 = vmatpush2.bf16.msra.mxu0 %v929
    %1062 = vmatprep.subr.bf16.mxu0 %v928
    %1063 = vmatpush2.bf16.msra.mxu0 %v927
    %1064 = vmatprep.subr.bf16.mxu0 %v926
    %1065 = vmatpush2.bf16.msra.mxu0 %v925
    %1066 = vmatprep.subr.bf16.mxu0 %v924
    %1067 = vmatpush2.bf16.msra.mxu0 %v923
    %1068 = vmatprep.subr.bf16.mxu0 %v922
    %1069 = vmatpush2.bf16.msra.mxu0 %v921
    %1070 = vmatprep.subr.bf16.mxu0 %v920
    %1071 = vmatpush2.bf16.msra.mxu0 %v919
    %1072 = vmatprep.mubr.bf16.mxu0 %v602
    %1073 = vmatmul.mubr.bf16.gmra.mxu0 %v601
    %v1074 = vpop.f32.mrf.mxu0
    %v1075 = vadd.f32 %v1034, %v1074
    %v1076 = vpop.f32.mrf.mxu0
    %v1077 = vadd.f32 %v1036, %v1076
    %v1078 = vpop.f32.mrf.mxu0
    %v1079 = vpop.f32.mrf.mxu0
    %1080 = vdwg.mxu0
    %vm1081 = vcmp.ge.f32.partialorder %v1075, 0.0
    %vm1082 = vcmp.ge.f32.partialorder %v1077, 0.0
    %v1083 = vmul.f32 %v1075, 0.01
    %v1084 = vmul.f32 %v1077, 0.01
    %v1085 = vsel %vm1081, %v1075, %v1083
    %v1086 = vsel %vm1082, %v1077, %v1084
    %v1087 = vpack.c.bf16 %v1085, %v1085
    %v1088 = vpack.c.bf16 %v1086, %v1086
    %v1089 = vld [vmem:[#allocation6] sm:$0xf]
    %v1090 = vld [vmem:[#allocation6 + $0x4] sm:$0xf]
    %v1091 = vld [vmem:[#allocation6 + $0x8] sm:$0xf]
    %v1092 = vld [vmem:[#allocation6 + $0xc] sm:$0xf]
    %v1093 = vld [vmem:[#allocation6 + $0x10] sm:$0xf]
    %v1094 = vld [vmem:[#allocation6 + $0x14] sm:$0xf]
    %v1095 = vld [vmem:[#allocation6 + $0x18] sm:$0xf]
    %v1096 = vld [vmem:[#allocation6 + $0x1c] sm:$0xf]
    %v1097 = vld [vmem:[#allocation6 + $0x20] sm:$0xf]
    %v1098 = vld [vmem:[#allocation6 + $0x24] sm:$0xf]
    %v1099 = vld [vmem:[#allocation6 + $0x28] sm:$0xf]
    %v1100 = vld [vmem:[#allocation6 + $0x2c] sm:$0xf]
    %v1101 = vld [vmem:[#allocation6 + $0x30] sm:$0xf]
    %v1102 = vld [vmem:[#allocation6 + $0x34] sm:$0xf]
    %v1103 = vld [vmem:[#allocation6 + $0x38] sm:$0xf]
    %v1104 = vld [vmem:[#allocation6 + $0x3c] sm:$0xf]
    %v1105 = vld [vmem:[#allocation6 + $0x40] sm:$0xf]
    %v1106 = vld [vmem:[#allocation6 + $0x44] sm:$0xf]
    %v1107 = vld [vmem:[#allocation6 + $0x48] sm:$0xf]
    %v1108 = vld [vmem:[#allocation6 + $0x4c] sm:$0xf]
    %v1109 = vld [vmem:[#allocation6 + $0x50] sm:$0xf]
    %v1110 = vld [vmem:[#allocation6 + $0x54] sm:$0xf]
    %v1111 = vld [vmem:[#allocation6 + $0x58] sm:$0xf]
    %v1112 = vld [vmem:[#allocation6 + $0x5c] sm:$0xf]
    %v1113 = vld [vmem:[#allocation6 + $0x60] sm:$0xf]
    %v1114 = vld [vmem:[#allocation6 + $0x64] sm:$0xf]
    %v1115 = vld [vmem:[#allocation6 + $0x68] sm:$0xf]
    %v1116 = vld [vmem:[#allocation6 + $0x6c] sm:$0xf]
    %v1117 = vld [vmem:[#allocation6 + $0x70] sm:$0xf]
    %v1118 = vld [vmem:[#allocation6 + $0x74] sm:$0xf]
    %v1119 = vld [vmem:[#allocation6 + $0x78] sm:$0xf]
    %v1120 = vld [vmem:[#allocation6 + $0x7c] sm:$0xf]
    %v1121 = vld [vmem:[%s6] sm:$0x1]
    %v1123 = vlaneseq
    %v1124 = vshrl.u32 %v1123, 7
    %v1125 = vsub.s32 0, %v1124
    %v1126 = vrot.slane %v1121, %v1125
    %v1160 = vunpack.c.l.b16 %v1089
    %v1161 = vunpack.c.l.b16 %v1090
    %v1162 = vunpack.c.l.b16 %v1091
    %v1163 = vunpack.c.l.b16 %v1092
    %v1164 = vunpack.c.l.b16 %v1093
    %v1165 = vunpack.c.l.b16 %v1094
    %v1166 = vunpack.c.l.b16 %v1095
    %v1167 = vunpack.c.l.b16 %v1096
    %v1168 = vunpack.c.l.b16 %v1097
    %v1169 = vunpack.c.l.b16 %v1098
    %v1170 = vunpack.c.l.b16 %v1099
    %v1171 = vunpack.c.l.b16 %v1100
    %v1172 = vunpack.c.l.b16 %v1101
    %v1173 = vunpack.c.l.b16 %v1102
    %v1174 = vunpack.c.l.b16 %v1103
    %v1175 = vunpack.c.l.b16 %v1104
    %v1176 = vunpack.c.l.b16 %v1105
    %v1177 = vunpack.c.l.b16 %v1106
    %v1178 = vunpack.c.l.b16 %v1107
    %v1179 = vunpack.c.l.b16 %v1108
    %v1180 = vunpack.c.l.b16 %v1109
    %v1181 = vunpack.c.l.b16 %v1110
    %v1182 = vunpack.c.l.b16 %v1111
    %v1183 = vunpack.c.l.b16 %v1112
    %v1184 = vunpack.c.l.b16 %v1113
    %v1185 = vunpack.c.l.b16 %v1114
    %v1186 = vunpack.c.l.b16 %v1115
    %v1187 = vunpack.c.l.b16 %v1116
    %v1188 = vunpack.c.l.b16 %v1117
    %v1189 = vunpack.c.l.b16 %v1118
    %v1190 = vunpack.c.l.b16 %v1119
    %v1191 = vunpack.c.l.b16 %v1120
    %v1192 = vpack.c.b16 %v1161, %v1160
    %v1193 = vpack.c.b16 %v1163, %v1162
    %v1194 = vpack.c.b16 %v1165, %v1164
    %v1195 = vpack.c.b16 %v1167, %v1166
    %v1196 = vpack.c.b16 %v1169, %v1168
    %v1197 = vpack.c.b16 %v1171, %v1170
    %v1198 = vpack.c.b16 %v1173, %v1172
    %v1199 = vpack.c.b16 %v1175, %v1174
    %v1200 = vpack.c.b16 %v1177, %v1176
    %v1201 = vpack.c.b16 %v1179, %v1178
    %v1202 = vpack.c.b16 %v1181, %v1180
    %v1203 = vpack.c.b16 %v1183, %v1182
    %v1204 = vpack.c.b16 %v1185, %v1184
    %v1205 = vpack.c.b16 %v1187, %v1186
    %v1206 = vpack.c.b16 %v1189, %v1188
    %v1207 = vpack.c.b16 %v1191, %v1190
    %1224 = vmatprep.subr.bf16.mxu0 0
    %1225 = vmatpush1.bf16.msra.mxu0 %v1199
    %1226 = vmatprep.subr.bf16.mxu0 0
    %1227 = vmatpush1.bf16.msra.mxu0 %v1198
    %1228 = vmatprep.subr.bf16.mxu0 0
    %1229 = vmatpush1.bf16.msra.mxu0 %v1197
    %1230 = vmatprep.subr.bf16.mxu0 0
    %1231 = vmatpush1.bf16.msra.mxu0 %v1196
    %1232 = vmatprep.subr.bf16.mxu0 0
    %1233 = vmatpush1.bf16.msra.mxu0 %v1195
    %1234 = vmatprep.subr.bf16.mxu0 0
    %1235 = vmatpush1.bf16.msra.mxu0 %v1194
    %1236 = vmatprep.subr.bf16.mxu0 0
    %1237 = vmatpush1.bf16.msra.mxu0 %v1193
    %1238 = vmatprep.subr.bf16.mxu0 0
    %1239 = vmatpush1.bf16.msra.mxu0 %v1192
    %1240 = vmatprep.subr.bf16.mxu0 0
    %1241 = vmatpush2.bf16.msra.mxu0 %v1207
    %1242 = vmatprep.subr.bf16.mxu0 0
    %1243 = vmatpush2.bf16.msra.mxu0 %v1206
    %1244 = vmatprep.subr.bf16.mxu0 0
    %1245 = vmatpush2.bf16.msra.mxu0 %v1205
    %1246 = vmatprep.subr.bf16.mxu0 0
    %1247 = vmatpush2.bf16.msra.mxu0 %v1204
    %1248 = vmatprep.subr.bf16.mxu0 0
    %1249 = vmatpush2.bf16.msra.mxu0 %v1203
    %1250 = vmatprep.subr.bf16.mxu0 0
    %1251 = vmatpush2.bf16.msra.mxu0 %v1202
    %1252 = vmatprep.subr.bf16.mxu0 0
    %1253 = vmatpush2.bf16.msra.mxu0 %v1201
    %1254 = vmatprep.subr.bf16.mxu0 0
    %1255 = vmatpush2.bf16.msra.mxu0 %v1200
    %1256 = vmatprep.mubr.bf16.mxu0 %v1088
    %1257 = vmatmul.mubr.bf16.gmra.mxu0 %v1087
    %v1258 = vpop.f32.mrf.mxu0
    %v1259 = vadd.f32 %v1126, %v1258
    %v1260 = vpop.f32.mrf.mxu0
    %v1261 = vpop.f32.mrf.mxu0
    %v1262 = vpop.f32.mrf.mxu0
    %1263 = vdwg.mxu0
    %vm1264 = vcmp.ge.f32.partialorder %v1259, 0.0
    %v1265 = vmul.f32 %v1259, 0.01
    %v1266 = vsel %vm1264, %v1259, %v1265
    %v1267 = vpack.c.bf16 %v1266, %v1266
    %v1268 = vld [vmem:[#allocation7] sm:$0xf]
    %v1269 = vld [vmem:[#allocation7 + $0x4] sm:$0xf]
    %v1270 = vld [vmem:[#allocation7 + $0x8] sm:$0xf]
    %v1271 = vld [vmem:[#allocation7 + $0xc] sm:$0xf]
    %v1272 = vld [vmem:[#allocation7 + $0x10] sm:$0xf]
    %v1273 = vld [vmem:[#allocation7 + $0x14] sm:$0xf]
    %v1274 = vld [vmem:[#allocation7 + $0x18] sm:$0xf]
    %v1275 = vld [vmem:[#allocation7 + $0x1c] sm:$0xf]
    %v1276 = vld [vmem:[#allocation7 + $0x20] sm:$0xf]
    %v1277 = vld [vmem:[#allocation7 + $0x24] sm:$0xf]
    %v1278 = vld [vmem:[#allocation7 + $0x28] sm:$0xf]
    %v1279 = vld [vmem:[#allocation7 + $0x2c] sm:$0xf]
    %v1280 = vld [vmem:[#allocation7 + $0x30] sm:$0xf]
    %v1281 = vld [vmem:[#allocation7 + $0x34] sm:$0xf]
    %v1282 = vld [vmem:[#allocation7 + $0x38] sm:$0xf]
    %v1283 = vld [vmem:[#allocation7 + $0x3c] sm:$0xf]
    %v1300 = vunpack.c.l.b16 %v1268
    %v1301 = vunpack.c.l.b16 %v1269
    %v1302 = vunpack.c.l.b16 %v1270
    %v1303 = vunpack.c.l.b16 %v1271
    %v1304 = vunpack.c.l.b16 %v1272
    %v1305 = vunpack.c.l.b16 %v1273
    %v1306 = vunpack.c.l.b16 %v1274
    %v1307 = vunpack.c.l.b16 %v1275
    %v1308 = vunpack.c.l.b16 %v1276
    %v1309 = vunpack.c.l.b16 %v1277
    %v1310 = vunpack.c.l.b16 %v1278
    %v1311 = vunpack.c.l.b16 %v1279
    %v1312 = vunpack.c.l.b16 %v1280
    %v1313 = vunpack.c.l.b16 %v1281
    %v1314 = vunpack.c.l.b16 %v1282
    %v1315 = vunpack.c.l.b16 %v1283
    %v1316 = vpack.c.b16 %v1301, %v1300
    %v1317 = vpack.c.b16 %v1303, %v1302
    %v1318 = vpack.c.b16 %v1305, %v1304
    %v1319 = vpack.c.b16 %v1307, %v1306
    %v1320 = vpack.c.b16 %v1309, %v1308
    %v1321 = vpack.c.b16 %v1311, %v1310
    %v1322 = vpack.c.b16 %v1313, %v1312
    %v1323 = vpack.c.b16 %v1315, %v1314
    %1332 = vmatprep.subr.bf16.mxu0 0
    %1333 = vmatpush1.bf16.msra.mxu0 %v1323
    %1334 = vmatprep.subr.bf16.mxu0 0
    %1335 = vmatpush1.bf16.msra.mxu0 %v1322
    %1336 = vmatprep.subr.bf16.mxu0 0
    %1337 = vmatpush1.bf16.msra.mxu0 %v1321
    %1338 = vmatprep.subr.bf16.mxu0 0
    %1339 = vmatpush1.bf16.msra.mxu0 %v1320
    %1340 = vmatprep.subr.bf16.mxu0 0
    %1341 = vmatpush1.bf16.msra.mxu0 %v1319
    %1342 = vmatprep.subr.bf16.mxu0 0
    %1343 = vmatpush1.bf16.msra.mxu0 %v1318
    %1344 = vmatprep.subr.bf16.mxu0 0
    %1345 = vmatpush1.bf16.msra.mxu0 %v1317
    %1346 = vmatprep.subr.bf16.mxu0 0
    %1347 = vmatpush1.bf16.msra.mxu0 %v1316
    %1348 = vmatprep.subr.bf16.mxu0 0
    %1349 = vmatpush2.bf16.msra.mxu0 0
    %1350 = vmatprep.subr.bf16.mxu0 0
    %1351 = vmatpush2.bf16.msra.mxu0 0
    %1352 = vmatprep.subr.bf16.mxu0 0
    %1353 = vmatpush2.bf16.msra.mxu0 0
    %1354 = vmatprep.subr.bf16.mxu0 0
    %1355 = vmatpush2.bf16.msra.mxu0 0
    %1356 = vmatprep.subr.bf16.mxu0 0
    %1357 = vmatpush2.bf16.msra.mxu0 0
    %1358 = vmatprep.subr.bf16.mxu0 0
    %1359 = vmatpush2.bf16.msra.mxu0 0
    %1360 = vmatprep.subr.bf16.mxu0 0
    %1361 = vmatpush2.bf16.msra.mxu0 0
    %1362 = vmatprep.subr.bf16.mxu0 0
    %1363 = vmatpush2.bf16.msra.mxu0 0
    %1364 = vmatprep.mubr.bf16.mxu0 0
    %1365 = vmatmul.mubr.bf16.gmra.mxu0 %v1267
    %v1366 = vpop.f32.mrf.mxu0
    %v1367 = vadd.f32 0.0, %v1366
    %v1368 = vpop.f32.mrf.mxu0
    %v1369 = vpop.f32.mrf.mxu0
    %v1370 = vpop.f32.mrf.mxu0
    %1371 = vdwg.mxu0
    %1372 = vst [vmem:[%s8] sm:$0x3] %v1367
    // Predicated region
    $region50: #{discriminator_forward.1} parent=1 // pred_check
      _
    $region51: #{discriminator_forward.1} parent=1 // pred_check_branch
      %1374 = sbr.rel (0) target = $region53
    $region52: #{discriminator_forward.1} parent=1 // pred_region
      _
    $region53: #{discriminator_forward.1} parent=1 // pred_fallthru
      _
    // Predicated region
    $region54: #{discriminator_forward.1} parent=1 // pred_check
      _
    $region55: #{discriminator_forward.1} parent=1 // pred_check_branch
      %1376 = sbr.rel (0) target = $region57
    $region56: #{discriminator_forward.1} parent=1 // pred_region
      _
    $region57: #{discriminator_forward.1} parent=1 // pred_fallthru
      _
    %1377 = vsyncpa [#allocation3], 1
    %1378 = vsyncpa [#allocation5], 1
    %1379 = vsyncpa [#allocation8], 1

</llo_original>
